<compile_context>
chip_gen: v6e
topology: v6e:2x2x1
jax: 0.10.0
libtpu: 0.0.40
codegen_flags: <defaults>
</compile_context>

<pallas_src>
import jax
import jax.numpy as jnp
from jax.experimental import pallas as pl
from jax.experimental.pallas import tpu as pltpu


def _embedding_kernel(x_ref, w1_ref, b1_ref, w2_ref, b2_ref, o_ref):
    # x_ref:  (1, N, D)  bf16   -- one triplet branch per grid step
    # w1_ref: (D, H)     bf16   (resident in VMEM across all grid steps)
    # b1_ref: (1, H)     f32
    # w2_ref: (H, E)     bf16   (resident)
    # b2_ref: (1, E)     f32
    # o_ref:  (1, N, E)  f32
    x = x_ref[0]                                           # (N, D) bf16
    h = jnp.dot(x, w1_ref[...], preferred_element_type=jnp.float32)
    h = h + b1_ref[...]                                    # (1, H) broadcast
    h = jnp.maximum(h, 0.0)                                # ReLU on the VPU
    out = jnp.dot(h.astype(w2_ref.dtype), w2_ref[...],
                  preferred_element_type=jnp.float32)
    out = out + b2_ref[...]
    o_ref[0] = out.astype(o_ref.dtype)                     # (N, E)


def _embed_batched(x_stacked, params):
    """Run the embedding net over a stack of inputs: (G, N, D) -> (G, N, E).

    One pallas_call; grid iterates the leading 'branch' axis while the weights
    stay resident in VMEM (their index_map is constant).
    """
    w1, b1, w2, b2 = params
    g, n, d = x_stacked.shape
    hidden = w1.shape[1]
    embed = w2.shape[1]

    # bf16 operands for the MXU; accumulation stays f32 inside the kernel.
    x_bf = x_stacked.astype(jnp.bfloat16)
    w1_bf = w1.astype(jnp.bfloat16)
    w2_bf = w2.astype(jnp.bfloat16)

    cost = pl.CostEstimate(
        flops=2 * g * n * d * hidden + 2 * g * n * hidden * embed,
        transcendentals=0,
        bytes_accessed=(x_bf.size * 2 + w1_bf.size * 2 + w2_bf.size * 2
                        + b1.size * 4 + b2.size * 4 + g * n * embed * 4),
    )

    # TODO(synk): for real-size embedding nets (D ~ 10^4+, H ~ 10^3+) add a
    # K-reduction grid axis + f32 VMEM accumulator instead of holding the full
    # (D, H) W1 block, to stay within v7x's smaller scoped VMEM.
    out = pl.pallas_call(
        _embedding_kernel,
        out_shape=jax.ShapeDtypeStruct((g, n, embed), jnp.float32),
        grid=(g,),
        in_specs=[
            pl.BlockSpec((1, n, d), lambda i: (i, 0, 0)),      # per-branch x
            pl.BlockSpec((d, hidden), lambda i: (0, 0)),       # W1 resident
            pl.BlockSpec((1, hidden), lambda i: (0, 0)),       # b1 resident
            pl.BlockSpec((hidden, embed), lambda i: (0, 0)),   # W2 resident
            pl.BlockSpec((1, embed), lambda i: (0, 0)),        # b2 resident
        ],
        out_specs=pl.BlockSpec((1, n, embed), lambda i: (i, 0, 0)),
        compiler_params=pltpu.CompilerParams(
            dimension_semantics=("parallel",)),                # megacore on v7x
        cost_estimate=cost,
    )(x_bf, w1_bf, b1, w2_bf, b2)
    return out


def _flatten_nchw(x):
    n = x.shape[0]
    d = x.shape[1] * x.shape[2] * x.shape[3]
    return x.reshape(n, d)      # row-major contiguous == torch .view(N, -1)


def triplet_net_forward(x1, x2, x3, params):
    """TripletNet.forward: one fused kernel over the 3 stacked branches."""
    x = jnp.stack([_flatten_nchw(x1), _flatten_nchw(x2), _flatten_nchw(x3)],
                  axis=0)                                   # (3, N, D)
    out = _embed_batched(x, params)                         # (3, N, E)
    return out[0], out[1], out[2]


def get_embedding(x, params):
    """TripletNet.get_embedding: single embedding_net forward pass."""
    out = _embed_batched(_flatten_nchw(x)[None], params)    # (1, N, E)
    return out[0]


def init_embedding_params(key, in_dim, hidden, embed):
    """Deterministic synthetic parameters for the embedding net."""
    k1, k2, k3, k4 = jax.random.split(key, 4)
    w1 = jax.random.normal(k1, (in_dim, hidden), jnp.float32) * 0.02
    b1 = jax.random.normal(k2, (1, hidden), jnp.float32) * 0.01
    w2 = jax.random.normal(k3, (hidden, embed), jnp.float32) * 0.02
    b2 = jax.random.normal(k4, (1, embed), jnp.float32) * 0.01
    return (w1, b1, w2, b2)


if __name__ == "__main__":
    # Small shapes: batch=2, channels=4, spatial=16x16 (NCHW), hidden=32, embed=16.
    N, C, H, W = 2, 4, 16, 16
    HIDDEN, EMBED = 32, 16
    D = C * H * W

    key = jax.random.PRNGKey(0)
    kx1, kx2, kx3, kp = jax.random.split(key, 4)
    x1 = jax.random.normal(kx1, (N, C, H, W), jnp.float32)
    x2 = jax.random.normal(kx2, (N, C, H, W), jnp.float32)
    x3 = jax.random.normal(kx3, (N, C, H, W), jnp.float32)

    params = init_embedding_params(kp, D, HIDDEN, EMBED)

    out1, out2, out3 = jax.jit(triplet_net_forward)(x1, x2, x3, params)
    jax.block_until_ready((out1, out2, out3))

    # Pure-JAX reference with matching bf16-operand / f32-accumulate math.
    def ref_embed(x):
        xf = x.reshape(x.shape[0], -1).astype(jnp.bfloat16)
        h = jnp.dot(xf, params[0].astype(jnp.bfloat16),
                    preferred_element_type=jnp.float32) + params[1]
        h = jnp.maximum(h, 0.0)
        return jnp.dot(h.astype(jnp.bfloat16), params[2].astype(jnp.bfloat16),
                       preferred_element_type=jnp.float32) + params[3]

    for o, x in ((out1, x1), (out2, x2), (out3, x3)):
        assert o.shape == (N, EMBED)
        assert jnp.allclose(o, ref_embed(x), atol=1e-2, rtol=1e-2)

    # get_embedding path (same kernel, single branch).
    e1 = jax.jit(get_embedding)(x1, params)
    jax.block_until_ready(e1)
    assert jnp.allclose(e1, ref_embed(x1), atol=1e-2, rtol=1e-2)

    print("KERNEL_OK")
</pallas_src>

<mosaic_0001>
module attributes {stable_mosaic.version = 11 : i64} {
  func.func @_embedding_kernel(%arg0: i32, %arg1: memref<1x2x1024xbf16, #tpu.memory_space<vmem>>, %arg2: memref<1024x32xbf16, #tpu.memory_space<vmem>>, %arg3: memref<1x32xf32, #tpu.memory_space<vmem>>, %arg4: memref<32x16xbf16, #tpu.memory_space<vmem>>, %arg5: memref<1x16xf32, #tpu.memory_space<vmem>>, %arg6: memref<1x2x16xf32, #tpu.memory_space<vmem>>) attributes {dimension_semantics = [#tpu.dimension_semantics<parallel>], iteration_bounds = array<i64: 3>, scalar_prefetch = 0 : i64, scratch_operands = 0 : i64, tpu.core_type = #tpu.core_type<tc>, window_params = [{transform_indices = @transform_0, window_bounds = array<i64: 1, 2, 1024>}, {pipeline_mode = #tpu.pipeline_mode<synchronous>, transform_indices = @transform_1, window_bounds = array<i64: 1024, 32>}, {pipeline_mode = #tpu.pipeline_mode<synchronous>, transform_indices = @transform_2, window_bounds = array<i64: 1, 32>}, {pipeline_mode = #tpu.pipeline_mode<synchronous>, transform_indices = @transform_3, window_bounds = array<i64: 32, 16>}, {pipeline_mode = #tpu.pipeline_mode<synchronous>, transform_indices = @transform_4, window_bounds = array<i64: 1, 16>}, {transform_indices = @transform_5, window_bounds = array<i64: 1, 2, 16>}]} {
    %c0 = arith.constant 0 : index
    %c0_0 = arith.constant 0 : index
    %c0_1 = arith.constant 0 : index
    %0 = vector.load %arg1[%c0, %c0_0, %c0_1] : memref<1x2x1024xbf16, #tpu.memory_space<vmem>>, vector<1x2x1024xbf16>
    %1 = vector.shape_cast %0 : vector<1x2x1024xbf16> to vector<2x1024xbf16>
    %c0_2 = arith.constant 0 : index
    %c0_3 = arith.constant 0 : index
    %2 = vector.load %arg2[%c0_2, %c0_3] : memref<1024x32xbf16, #tpu.memory_space<vmem>>, vector<1024x32xbf16>
    %cst = arith.constant dense<0.000000e+00> : vector<2x32xf32>
    %3 = tpu.matmul %1, %2, %cst {dimension_numbers = #tpu.dot_dimension_numbers<[1], [0], [0], [1], [0, 0, 1, 1], [], []>} : vector<2x1024xbf16>, vector<1024x32xbf16>, vector<2x32xf32> -> vector<2x32xf32>
    %c0_4 = arith.constant 0 : index
    %c0_5 = arith.constant 0 : index
    %4 = vector.load %arg3[%c0_4, %c0_5] : memref<1x32xf32, #tpu.memory_space<vmem>>, vector<1x32xf32>
    %5 = vector.broadcast %4 : vector<1x32xf32> to vector<2x32xf32>
    %6 = arith.addf %3, %5 : vector<2x32xf32>
    %cst_6 = arith.constant 0.000000e+00 : f32
    %7 = vector.broadcast %cst_6 : f32 to vector<2x32xf32>
    %8 = arith.maximumf %6, %7 : vector<2x32xf32>
    %9 = arith.truncf %8 : vector<2x32xf32> to vector<2x32xbf16>
    %c0_7 = arith.constant 0 : index
    %c0_8 = arith.constant 0 : index
    %10 = vector.load %arg4[%c0_7, %c0_8] : memref<32x16xbf16, #tpu.memory_space<vmem>>, vector<32x16xbf16>
    %cst_9 = arith.constant dense<0.000000e+00> : vector<2x16xf32>
    %11 = tpu.matmul %9, %10, %cst_9 {dimension_numbers = #tpu.dot_dimension_numbers<[1], [0], [0], [1], [0, 0, 1, 1], [], []>} : vector<2x32xbf16>, vector<32x16xbf16>, vector<2x16xf32> -> vector<2x16xf32>
    %c0_10 = arith.constant 0 : index
    %c0_11 = arith.constant 0 : index
    %12 = vector.load %arg5[%c0_10, %c0_11] : memref<1x16xf32, #tpu.memory_space<vmem>>, vector<1x16xf32>
    %13 = vector.broadcast %12 : vector<1x16xf32> to vector<2x16xf32>
    %14 = arith.addf %11, %13 : vector<2x16xf32>
    %c0_12 = arith.constant 0 : index
    %c0_13 = arith.constant 0 : index
    %c0_14 = arith.constant 0 : index
    %15 = vector.load %arg6[%c0_12, %c0_13, %c0_14] : memref<1x2x16xf32, #tpu.memory_space<vmem>>, vector<1x2x16xf32>
    %16 = vector.shape_cast %15 : vector<1x2x16xf32> to vector<2x16xf32>
    %17 = vector.shape_cast %14 : vector<2x16xf32> to vector<1x2x16xf32>
    tpu.vector_store %arg6[%c0_12, %c0_13, %c0_14], %17 {strides = array<i32>} : memref<1x2x16xf32, #tpu.memory_space<vmem>>, vector<1x2x16xf32>,
    return
  }
  func.func @transform_0(%arg0: i32) -> (i32, i32, i32) {
    %c0_i32 = arith.constant 0 : i32
    %c0_i32_0 = arith.constant 0 : i32
    %c0_i32_1 = arith.constant 0 : i32
    return %arg0, %c0_i32, %c0_i32_0 : i32, i32, i32
  }
  func.func @transform_1(%arg0: i32) -> (i32, i32) {
    %c0_i32 = arith.constant 0 : i32
    %c0_i32_0 = arith.constant 0 : i32
    %c0_i32_1 = arith.constant 0 : i32
    return %c0_i32, %c0_i32_0 : i32, i32
  }
  func.func @transform_2(%arg0: i32) -> (i32, i32) {
    %c0_i32 = arith.constant 0 : i32
    %c0_i32_0 = arith.constant 0 : i32
    %c0_i32_1 = arith.constant 0 : i32
    return %c0_i32, %c0_i32_0 : i32, i32
  }
  func.func @transform_3(%arg0: i32) -> (i32, i32) {
    %c0_i32 = arith.constant 0 : i32
    %c0_i32_0 = arith.constant 0 : i32
    %c0_i32_1 = arith.constant 0 : i32
    return %c0_i32, %c0_i32_0 : i32, i32
  }
  func.func @transform_4(%arg0: i32) -> (i32, i32) {
    %c0_i32 = arith.constant 0 : i32
    %c0_i32_0 = arith.constant 0 : i32
    %c0_i32_1 = arith.constant 0 : i32
    return %c0_i32, %c0_i32_0 : i32, i32
  }
  func.func @transform_5(%arg0: i32) -> (i32, i32, i32) {
    %c0_i32 = arith.constant 0 : i32
    %c0_i32_0 = arith.constant 0 : i32
    %c0_i32_1 = arith.constant 0 : i32
    return %arg0, %c0_i32, %c0_i32_0 : i32, i32, i32
  }
}

</mosaic_0001>

<llo_original>
// kernel: triplet_net_forward.1
$region0: #{triplet_net_forward.1}
  #allocation0 [shape = 'u32[]', space=smem, size = 0x4, offset = 0x4, fixed_abs, tag = 'smem constant byte address 0x4 - core index']
  #allocation1 [shape = 'u32[144,128]{1,0:T(1,128)}', space=vmem, size = 0x12000, scoped, tag = 'internal scratch']
  %s0 = inlined_call_operand.vmem [shape: bf16[3,2,1024], index: 0, kind: input, shape index: {}]
  %s1 = inlined_call_operand.vmem [shape: bf16[1024,32], index: 1, kind: input, shape index: {}]
  %s2 = inlined_call_operand.vmem [shape: f32[1,32], index: 2, kind: input, shape index: {}]
  %s3 = inlined_call_operand.vmem [shape: bf16[32,16], index: 3, kind: input, shape index: {}]
  %s4 = inlined_call_operand.vmem [shape: f32[1,16], index: 4, kind: input, shape index: {}]
  %s5 = inlined_call_operand.vmem [shape: f32[3,2,16], index: 5, kind: output, shape index: {}]
  %s6 = sld [smem:[#allocation0]]
  $region53: #{triplet_net_forward.1} parent=0
    _
  %s8 = ssub.s32 1, %s6
  %s9 = scalar_select 0, %s8, %s6
  loop: start=0, step=1, limit=5
  $region2: #{triplet_net_forward.1} parent=0 // loop_pre_header
    _
  $region3: #{triplet_net_forward.1} parent=0 // loop_header
    %s11 = sphi 0, %s15
    %p12 = scmp.ge.s32.totalorder %s11, 5
    %s21 = sphi 0, %s23
    %s24 = sphi 0, %s21
    %s25 = sphi 0, %s24
    %s41 = sphi 0, %s25
    %s45 = sphi 0, %s45
    %s47 = sphi 0, %s45
    %s48 = sphi 0, %s47
    %s62 = sphi 0, %s48
    %s66 = sphi 0, %s66
    %s68 = sphi 0, %s66
    %s69 = sphi 0, %s68
    %s83 = sphi 0, %s69
    %s87 = sphi 0, %s87
    %s89 = sphi 0, %s87
    %s90 = sphi 0, %s89
    %s104 = sphi 0, %s90
    %s108 = sphi 0, %s108
    %s110 = sphi 0, %s108
    %s111 = sphi 0, %s110
    %s125 = sphi 0, %s111
    %s131 = sphi 0, %s133
    %s134 = sphi 0, %s131
    %s135 = sphi 0, %s134
    %s151 = sphi 0, %s135
  $region4: #{triplet_net_forward.1} parent=0 // loop_header_branch
    %14 = sbr.rel (%p12) target = $region8
  $region5: #{triplet_net_forward.1} parent=0 // loop_body
    %s16 = ssub.s32 %s11, 1
    %s17 = ssub.s32 %s11, 2
    %s18 = sadd.s32 %s11, 1
    %s19 = ssub.s32 %s11, %s18
    %p20 = scmp.eq.s32.totalorder %s19, 0
    %s22 = sadd.s32 %s21, 1
    %s23 = scalar_select %p20, %s21, %s22
    %p26 = pneg %p20
    %p27 = scmp.eq.s32.totalorder %s11, 2
    %p28 = por %p26, %p27
    %p29 = scmp.ne.s32.totalorder %s21, %s24
    %p30 = scmp.eq.s32.totalorder %s11, 0
    %p31 = por %p29, %p30
    %p32 = scmp.ne.s32.totalorder %s21, %s24
    %p33 = scmp.eq.s32.totalorder %s16, 2
    %p34 = por %p32, %p33
    %p35 = scmp.ne.s32.totalorder %s24, %s25
    %p36 = scmp.eq.s32.totalorder %s16, 0
    %p37 = por %p35, %p36
    %p38 = scmp.ne.s32.totalorder %s24, %s25
    %p39 = scmp.eq.s32.totalorder %s17, 2
    %p40 = por %p38, %p39
    %p42 = scmp.ne.s32.totalorder %s25, %s41
    %p43 = scmp.eq.s32.totalorder %s17, 0
    %p44 = por %p42, %p43
    %s46 = sadd.s32 %s45, 1
    %p49 = scmp.eq.s32.totalorder %s11, 2
    %p50 = scmp.ne.s32.totalorder %s45, %s47
    %p51 = scmp.eq.s32.totalorder %s11, 0
    %p52 = por %p50, %p51
    %p53 = scmp.ne.s32.totalorder %s45, %s47
    %p54 = scmp.eq.s32.totalorder %s16, 2
    %p55 = por %p53, %p54
    %p56 = scmp.ne.s32.totalorder %s47, %s48
    %p57 = scmp.eq.s32.totalorder %s16, 0
    %p58 = por %p56, %p57
    %p59 = scmp.ne.s32.totalorder %s47, %s48
    %p60 = scmp.eq.s32.totalorder %s17, 2
    %p61 = por %p59, %p60
    %p63 = scmp.ne.s32.totalorder %s48, %s62
    %p64 = scmp.eq.s32.totalorder %s17, 0
    %p65 = por %p63, %p64
    %s67 = sadd.s32 %s66, 1
    %p70 = scmp.eq.s32.totalorder %s11, 2
    %p71 = scmp.ne.s32.totalorder %s66, %s68
    %p72 = scmp.eq.s32.totalorder %s11, 0
    %p73 = por %p71, %p72
    %p74 = scmp.ne.s32.totalorder %s66, %s68
    %p75 = scmp.eq.s32.totalorder %s16, 2
    %p76 = por %p74, %p75
    %p77 = scmp.ne.s32.totalorder %s68, %s69
    %p78 = scmp.eq.s32.totalorder %s16, 0
    %p79 = por %p77, %p78
    %p80 = scmp.ne.s32.totalorder %s68, %s69
    %p81 = scmp.eq.s32.totalorder %s17, 2
    %p82 = por %p80, %p81
    %p84 = scmp.ne.s32.totalorder %s69, %s83
    %p85 = scmp.eq.s32.totalorder %s17, 0
    %p86 = por %p84, %p85
    %s88 = sadd.s32 %s87, 1
    %p91 = scmp.eq.s32.totalorder %s11, 2
    %p92 = scmp.ne.s32.totalorder %s87, %s89
    %p93 = scmp.eq.s32.totalorder %s11, 0
    %p94 = por %p92, %p93
    %p95 = scmp.ne.s32.totalorder %s87, %s89
    %p96 = scmp.eq.s32.totalorder %s16, 2
    %p97 = por %p95, %p96
    %p98 = scmp.ne.s32.totalorder %s89, %s90
    %p99 = scmp.eq.s32.totalorder %s16, 0
    %p100 = por %p98, %p99
    %p101 = scmp.ne.s32.totalorder %s89, %s90
    %p102 = scmp.eq.s32.totalorder %s17, 2
    %p103 = por %p101, %p102
    %p105 = scmp.ne.s32.totalorder %s90, %s104
    %p106 = scmp.eq.s32.totalorder %s17, 0
    %p107 = por %p105, %p106
    %s109 = sadd.s32 %s108, 1
    %p112 = scmp.eq.s32.totalorder %s11, 2
    %p113 = scmp.ne.s32.totalorder %s108, %s110
    %p114 = scmp.eq.s32.totalorder %s11, 0
    %p115 = por %p113, %p114
    %p116 = scmp.ne.s32.totalorder %s108, %s110
    %p117 = scmp.eq.s32.totalorder %s16, 2
    %p118 = por %p116, %p117
    %p119 = scmp.ne.s32.totalorder %s110, %s111
    %p120 = scmp.eq.s32.totalorder %s16, 0
    %p121 = por %p119, %p120
    %p122 = scmp.ne.s32.totalorder %s110, %s111
    %p123 = scmp.eq.s32.totalorder %s17, 2
    %p124 = por %p122, %p123
    %p126 = scmp.ne.s32.totalorder %s111, %s125
    %p127 = scmp.eq.s32.totalorder %s17, 0
    %p128 = por %p126, %p127
    %s129 = ssub.s32 %s11, %s18
    %p130 = scmp.eq.s32.totalorder %s129, 0
    %s132 = sadd.s32 %s131, 1
    %s133 = scalar_select %p130, %s131, %s132
    %p136 = pneg %p130
    %p137 = scmp.eq.s32.totalorder %s11, 2
    %p138 = por %p136, %p137
    %p139 = scmp.ne.s32.totalorder %s131, %s134
    %p140 = scmp.eq.s32.totalorder %s11, 0
    %p141 = por %p139, %p140
    %p142 = scmp.ne.s32.totalorder %s131, %s134
    %p143 = scmp.eq.s32.totalorder %s16, 2
    %p144 = por %p142, %p143
    %p145 = scmp.ne.s32.totalorder %s134, %s135
    %p146 = scmp.eq.s32.totalorder %s16, 0
    %p147 = por %p145, %p146
    %p148 = scmp.ne.s32.totalorder %s134, %s135
    %p149 = scmp.eq.s32.totalorder %s17, 2
    %p150 = por %p148, %p149
    %p152 = scmp.ne.s32.totalorder %s135, %s151
    %p153 = scmp.eq.s32.totalorder %s17, 0
    %p154 = por %p152, %p153
    %p155 = scmp.le.s32.totalorder 1, %s11
    %p156 = scmp.lt.s32.totalorder %s11, 4
    %p157 = pnand %p155, %p156
    %p158 = pneg %p157
    // Predicated region
    $region9: #{triplet_net_forward.1} parent=5 // pred_check
      _
    $region10: #{triplet_net_forward.1} parent=5 // pred_check_branch
      %160 = sbr.rel (%p157) target = $region12
    $region11: #{triplet_net_forward.1} parent=5 // pred_region
      %s161 = ssub.s32 %s11, 1
      // Predicated region
      $region13: #{triplet_net_forward.1} parent=11 // pred_check
        %p162 = pneg %p58
      $region14: #{triplet_net_forward.1} parent=11 // pred_check_branch
        %164 = sbr.rel (%p162) target = $region16
      $region15: #{triplet_net_forward.1} parent=11 // pred_region
        _
      $region16: #{triplet_net_forward.1} parent=11 // pred_fallthru
        _
      // Predicated region
      $region17: #{triplet_net_forward.1} parent=11 // pred_check
        %p165 = pneg %p79
      $region18: #{triplet_net_forward.1} parent=11 // pred_check_branch
        %167 = sbr.rel (%p165) target = $region20
      $region19: #{triplet_net_forward.1} parent=11 // pred_region
        _
      $region20: #{triplet_net_forward.1} parent=11 // pred_fallthru
        _
      // Predicated region
      $region21: #{triplet_net_forward.1} parent=11 // pred_check
        %p168 = pneg %p100
      $region22: #{triplet_net_forward.1} parent=11 // pred_check_branch
        %170 = sbr.rel (%p168) target = $region24
      $region23: #{triplet_net_forward.1} parent=11 // pred_region
        _
      $region24: #{triplet_net_forward.1} parent=11 // pred_fallthru
        _
      // Predicated region
      $region25: #{triplet_net_forward.1} parent=11 // pred_check
        %p171 = pneg %p121
      $region26: #{triplet_net_forward.1} parent=11 // pred_check_branch
        %173 = sbr.rel (%p171) target = $region28
      $region27: #{triplet_net_forward.1} parent=11 // pred_region
        _
      $region28: #{triplet_net_forward.1} parent=11 // pred_fallthru
        _
    $region12: #{triplet_net_forward.1} parent=5 // pred_fallthru
      _
    %p174 = scmp.lt.s32.totalorder %s11, 3
    // Predicated region
    $region29: #{triplet_net_forward.1} parent=5 // pred_check
      %p175 = pneg %p174
    $region30: #{triplet_net_forward.1} parent=5 // pred_check_branch
      %177 = sbr.rel (%p175) target = $region32
    $region31: #{triplet_net_forward.1} parent=5 // pred_region
      // Predicated region
      $region33: #{triplet_net_forward.1} parent=31 // pred_check
        %p178 = pneg %p31
      $region34: #{triplet_net_forward.1} parent=31 // pred_check_branch
        %180 = sbr.rel (%p178) target = $region36
      $region35: #{triplet_net_forward.1} parent=31 // pred_region
        %p181 = scmp.lt.s32.totalorder %s11, 2
        %s182 = scalar_select %p181, %s11, 2
        %s183 = smul.addr %s182, 8
        %s184 = scalar_lea.vmem %s0, %s183
      $region36: #{triplet_net_forward.1} parent=31 // pred_fallthru
        _
    $region32: #{triplet_net_forward.1} parent=5 // pred_fallthru
      _
    %p185 = scmp.le.s32.totalorder 1, %s11
    %p186 = scmp.lt.s32.totalorder %s11, 4
    %p187 = pnand %p185, %p186
    %p188 = pneg %p187
    // Predicated region
    $region37: #{triplet_net_forward.1} parent=5 // pred_check
      _
    $region38: #{triplet_net_forward.1} parent=5 // pred_check_branch
      %190 = sbr.rel (%p187) target = $region40
    $region39: #{triplet_net_forward.1} parent=5 // pred_region
      %s191 = ssub.s32 %s11, 1
      %p192 = scmp.lt.s32.totalorder %s16, 2
      %s193 = scalar_select %p192, %s16, 2
      %s194 = smul.addr %s193, 8
      %s195 = scalar_lea.vmem %s0, %s194
      %p196 = pneg %p37
      %p197 = pneg %p34
      %p198 = pneg %p58
      %p199 = pneg %p55
      %p200 = pneg %p79
      %p201 = pneg %p76
      %p202 = pneg %p100
      %p203 = pneg %p97
      %p204 = pneg %p121
      %p205 = pneg %p118
      %p206 = pneg %p147
      %p207 = pneg %p144
      %p208 = scmp.lt.s32.totalorder %s16, 2
      %s209 = scalar_select %p208, %s16, 2
      %s210 = smul.addr %s209, 2
      %s211 = scalar_lea.vmem %s5, %s210
      %p212 = scmp.lt.s32.totalorder %s16, 2
      %s213 = scalar_select %p212, %s16, 2
      %s214 = smul.addr %s213, 8
      %s215 = scalar_lea.vmem %s0, %s214
      %p216 = scmp.lt.s32.totalorder %s16, 2
      %s217 = scalar_select %p216, %s16, 2
      %s218 = smul.addr %s217, 2
      %s219 = scalar_lea.vmem %s5, %s218
      %v221 = vld [vmem:[%s215] sm:$0xff]
      %v222 = vld [vmem:[%s1] sm:$0xf]
      %v223 = vld [vmem:[%s1 + $0x4] sm:$0xf]
      %v224 = vld [vmem:[%s1 + $0x8] sm:$0xf]
      %v225 = vld [vmem:[%s1 + $0xc] sm:$0xf]
      %v226 = vld [vmem:[%s1 + $0x10] sm:$0xf]
      %v227 = vld [vmem:[%s1 + $0x14] sm:$0xf]
      %v228 = vld [vmem:[%s1 + $0x18] sm:$0xf]
      %v229 = vld [vmem:[%s1 + $0x1c] sm:$0xf]
      %v230 = vld [vmem:[%s1 + $0x20] sm:$0xf]
      %v231 = vld [vmem:[%s1 + $0x24] sm:$0xf]
      %v232 = vld [vmem:[%s1 + $0x28] sm:$0xf]
      %v233 = vld [vmem:[%s1 + $0x2c] sm:$0xf]
      %v234 = vld [vmem:[%s1 + $0x30] sm:$0xf]
      %v235 = vld [vmem:[%s1 + $0x34] sm:$0xf]
      %v236 = vld [vmem:[%s1 + $0x38] sm:$0xf]
      %v237 = vld [vmem:[%s1 + $0x3c] sm:$0xf]
      %v238 = vld [vmem:[%s1 + $0x40] sm:$0xf]
      %v239 = vld [vmem:[%s1 + $0x44] sm:$0xf]
      %v240 = vld [vmem:[%s1 + $0x48] sm:$0xf]
      %v241 = vld [vmem:[%s1 + $0x4c] sm:$0xf]
      %v242 = vld [vmem:[%s1 + $0x50] sm:$0xf]
      %v243 = vld [vmem:[%s1 + $0x54] sm:$0xf]
      %v244 = vld [vmem:[%s1 + $0x58] sm:$0xf]
      %v245 = vld [vmem:[%s1 + $0x5c] sm:$0xf]
      %v246 = vld [vmem:[%s1 + $0x60] sm:$0xf]
      %v247 = vld [vmem:[%s1 + $0x64] sm:$0xf]
      %v248 = vld [vmem:[%s1 + $0x68] sm:$0xf]
      %v249 = vld [vmem:[%s1 + $0x6c] sm:$0xf]
      %v250 = vld [vmem:[%s1 + $0x70] sm:$0xf]
      %v251 = vld [vmem:[%s1 + $0x74] sm:$0xf]
      %v252 = vld [vmem:[%s1 + $0x78] sm:$0xf]
      %v253 = vld [vmem:[%s1 + $0x7c] sm:$0xf]
      %v254 = vld [vmem:[%s1 + $0x80] sm:$0xf]
      %v255 = vld [vmem:[%s1 + $0x84] sm:$0xf]
      %v256 = vld [vmem:[%s1 + $0x88] sm:$0xf]
      %v257 = vld [vmem:[%s1 + $0x8c] sm:$0xf]
      %v258 = vld [vmem:[%s1 + $0x90] sm:$0xf]
      %v259 = vld [vmem:[%s1 + $0x94] sm:$0xf]
      %v260 = vld [vmem:[%s1 + $0x98] sm:$0xf]
      %v261 = vld [vmem:[%s1 + $0x9c] sm:$0xf]
      %v262 = vld [vmem:[%s1 + $0xa0] sm:$0xf]
      %v263 = vld [vmem:[%s1 + $0xa4] sm:$0xf]
      %v264 = vld [vmem:[%s1 + $0xa8] sm:$0xf]
      %v265 = vld [vmem:[%s1 + $0xac] sm:$0xf]
      %v266 = vld [vmem:[%s1 + $0xb0] sm:$0xf]
      %v267 = vld [vmem:[%s1 + $0xb4] sm:$0xf]
      %v268 = vld [vmem:[%s1 + $0xb8] sm:$0xf]
      %v269 = vld [vmem:[%s1 + $0xbc] sm:$0xf]
      %v270 = vld [vmem:[%s1 + $0xc0] sm:$0xf]
      %v271 = vld [vmem:[%s1 + $0xc4] sm:$0xf]
      %v272 = vld [vmem:[%s1 + $0xc8] sm:$0xf]
      %v273 = vld [vmem:[%s1 + $0xcc] sm:$0xf]
      %v274 = vld [vmem:[%s1 + $0xd0] sm:$0xf]
      %v275 = vld [vmem:[%s1 + $0xd4] sm:$0xf]
      %v276 = vld [vmem:[%s1 + $0xd8] sm:$0xf]
      %v277 = vld [vmem:[%s1 + $0xdc] sm:$0xf]
      %v278 = vld [vmem:[%s1 + $0xe0] sm:$0xf]
      %v279 = vld [vmem:[%s1 + $0xe4] sm:$0xf]
      %v280 = vld [vmem:[%s1 + $0xe8] sm:$0xf]
      %v281 = vld [vmem:[%s1 + $0xec] sm:$0xf]
      %v282 = vld [vmem:[%s1 + $0xf0] sm:$0xf]
      %v283 = vld [vmem:[%s1 + $0xf4] sm:$0xf]
      %v284 = vld [vmem:[%s1 + $0xf8] sm:$0xf]
      %v285 = vld [vmem:[%s1 + $0xfc] sm:$0xf]
      %v286 = vld [vmem:[%s1 + $0x100] sm:$0xf]
      %v287 = vld [vmem:[%s1 + $0x104] sm:$0xf]
      %v288 = vld [vmem:[%s1 + $0x108] sm:$0xf]
      %v289 = vld [vmem:[%s1 + $0x10c] sm:$0xf]
      %v290 = vld [vmem:[%s1 + $0x110] sm:$0xf]
      %v291 = vld [vmem:[%s1 + $0x114] sm:$0xf]
      %v292 = vld [vmem:[%s1 + $0x118] sm:$0xf]
      %v293 = vld [vmem:[%s1 + $0x11c] sm:$0xf]
      %v294 = vld [vmem:[%s1 + $0x120] sm:$0xf]
      %v295 = vld [vmem:[%s1 + $0x124] sm:$0xf]
      %v296 = vld [vmem:[%s1 + $0x128] sm:$0xf]
      %v297 = vld [vmem:[%s1 + $0x12c] sm:$0xf]
      %v298 = vld [vmem:[%s1 + $0x130] sm:$0xf]
      %v299 = vld [vmem:[%s1 + $0x134] sm:$0xf]
      %v300 = vld [vmem:[%s1 + $0x138] sm:$0xf]
      %v301 = vld [vmem:[%s1 + $0x13c] sm:$0xf]
      %v302 = vld [vmem:[%s1 + $0x140] sm:$0xf]
      %v303 = vld [vmem:[%s1 + $0x144] sm:$0xf]
      %v304 = vld [vmem:[%s1 + $0x148] sm:$0xf]
      %v305 = vld [vmem:[%s1 + $0x14c] sm:$0xf]
      %v306 = vld [vmem:[%s1 + $0x150] sm:$0xf]
      %v307 = vld [vmem:[%s1 + $0x154] sm:$0xf]
      %v308 = vld [vmem:[%s1 + $0x158] sm:$0xf]
      %v309 = vld [vmem:[%s1 + $0x15c] sm:$0xf]
      %v310 = vld [vmem:[%s1 + $0x160] sm:$0xf]
      %v311 = vld [vmem:[%s1 + $0x164] sm:$0xf]
      %v312 = vld [vmem:[%s1 + $0x168] sm:$0xf]
      %v313 = vld [vmem:[%s1 + $0x16c] sm:$0xf]
      %v314 = vld [vmem:[%s1 + $0x170] sm:$0xf]
      %v315 = vld [vmem:[%s1 + $0x174] sm:$0xf]
      %v316 = vld [vmem:[%s1 + $0x178] sm:$0xf]
      %v317 = vld [vmem:[%s1 + $0x17c] sm:$0xf]
      %v318 = vld [vmem:[%s1 + $0x180] sm:$0xf]
      %v319 = vld [vmem:[%s1 + $0x184] sm:$0xf]
      %v320 = vld [vmem:[%s1 + $0x188] sm:$0xf]
      %v321 = vld [vmem:[%s1 + $0x18c] sm:$0xf]
      %v322 = vld [vmem:[%s1 + $0x190] sm:$0xf]
      %v323 = vld [vmem:[%s1 + $0x194] sm:$0xf]
      %v324 = vld [vmem:[%s1 + $0x198] sm:$0xf]
      %v325 = vld [vmem:[%s1 + $0x19c] sm:$0xf]
      %v326 = vld [vmem:[%s1 + $0x1a0] sm:$0xf]
      %v327 = vld [vmem:[%s1 + $0x1a4] sm:$0xf]
      %v328 = vld [vmem:[%s1 + $0x1a8] sm:$0xf]
      %v329 = vld [vmem:[%s1 + $0x1ac] sm:$0xf]
      %v330 = vld [vmem:[%s1 + $0x1b0] sm:$0xf]
      %v331 = vld [vmem:[%s1 + $0x1b4] sm:$0xf]
      %v332 = vld [vmem:[%s1 + $0x1b8] sm:$0xf]
      %v333 = vld [vmem:[%s1 + $0x1bc] sm:$0xf]
      %v334 = vld [vmem:[%s1 + $0x1c0] sm:$0xf]
      %v335 = vld [vmem:[%s1 + $0x1c4] sm:$0xf]
      %v336 = vld [vmem:[%s1 + $0x1c8] sm:$0xf]
      %v337 = vld [vmem:[%s1 + $0x1cc] sm:$0xf]
      %v338 = vld [vmem:[%s1 + $0x1d0] sm:$0xf]
      %v339 = vld [vmem:[%s1 + $0x1d4] sm:$0xf]
      %v340 = vld [vmem:[%s1 + $0x1d8] sm:$0xf]
      %v341 = vld [vmem:[%s1 + $0x1dc] sm:$0xf]
      %v342 = vld [vmem:[%s1 + $0x1e0] sm:$0xf]
      %v343 = vld [vmem:[%s1 + $0x1e4] sm:$0xf]
      %v344 = vld [vmem:[%s1 + $0x1e8] sm:$0xf]
      %v345 = vld [vmem:[%s1 + $0x1ec] sm:$0xf]
      %v346 = vld [vmem:[%s1 + $0x1f0] sm:$0xf]
      %v347 = vld [vmem:[%s1 + $0x1f4] sm:$0xf]
      %v348 = vld [vmem:[%s1 + $0x1f8] sm:$0xf]
      %v349 = vld [vmem:[%s1 + $0x1fc] sm:$0xf]
      %v350 = vld [vmem:[%s2] sm:$0x1]
      %v352 = vlaneseq
      %v353 = vshrl.u32 %v352, 7
      %v354 = vsub.s32 0, %v353
      %v355 = vrot.slane %v350, %v354
      %v358 = vcombine.high %v221, %v221
      %v360 = vunpack.c.l.s4 1966171168
      %v361 = vunpack.c.0.s8 %v360
      %v362 = vlaneseq
      %v363 = vshrl.u32 %v362, 7
      %v364 = vsub.s32 %v361, %v363
      %v365 = vrot.slane %v221, %v364
      %v367 = vunpack.c.l.s4 1966171168
      %v368 = vunpack.c.0.s8 %v367
      %v369 = vlaneseq
      %v370 = vshrl.u32 %v369, 7
      %v371 = vsub.s32 %v368, %v370
      %v372 = vrot.slane %v358, %v371
      %v373 = vcombine.high %v365, %v365
      %v374 = vcombine.high %v372, %v372
      %v376 = vunpack.c.l.s4 1966171168
      %v377 = vunpack.c.0.s8 %v376
      %v378 = vlaneseq
      %v379 = vshrl.u32 %v378, 7
      %v380 = vsub.s32 %v377, %v379
      %v381 = vrot.slane %v365, %v380
      %v383 = vunpack.c.l.s4 1966171168
      %v384 = vunpack.c.0.s8 %v383
      %v385 = vlaneseq
      %v386 = vshrl.u32 %v385, 7
      %v387 = vsub.s32 %v384, %v386
      %v388 = vrot.slane %v372, %v387
      %v390 = vunpack.c.l.s4 1966171168
      %v391 = vunpack.c.0.s8 %v390
      %v392 = vlaneseq
      %v393 = vshrl.u32 %v392, 7
      %v394 = vsub.s32 %v391, %v393
      %v395 = vrot.slane %v373, %v394
      %v397 = vunpack.c.l.s4 1966171168
      %v398 = vunpack.c.0.s8 %v397
      %v399 = vlaneseq
      %v400 = vshrl.u32 %v399, 7
      %v401 = vsub.s32 %v398, %v400
      %v402 = vrot.slane %v374, %v401
      %v403 = vcombine.high %v381, %v381
      %v404 = vcombine.high %v388, %v388
      %v405 = vcombine.high %v395, %v395
      %v406 = vcombine.high %v402, %v402
      %v543 = vunpack.c.l.b16 %v222
      %v544 = vunpack.c.l.b16 %v223
      %v545 = vunpack.c.l.b16 %v224
      %v546 = vunpack.c.l.b16 %v225
      %v547 = vunpack.c.l.b16 %v226
      %v548 = vunpack.c.l.b16 %v227
      %v549 = vunpack.c.l.b16 %v228
      %v550 = vunpack.c.l.b16 %v229
      %v551 = vunpack.c.l.b16 %v230
      %v552 = vunpack.c.l.b16 %v231
      %v553 = vunpack.c.l.b16 %v232
      %v554 = vunpack.c.l.b16 %v233
      %v555 = vunpack.c.l.b16 %v234
      %v556 = vunpack.c.l.b16 %v235
      %v557 = vunpack.c.l.b16 %v236
      %v558 = vunpack.c.l.b16 %v237
      %v559 = vunpack.c.l.b16 %v238
      %v560 = vunpack.c.l.b16 %v239
      %v561 = vunpack.c.l.b16 %v240
      %v562 = vunpack.c.l.b16 %v241
      %v563 = vunpack.c.l.b16 %v242
      %v564 = vunpack.c.l.b16 %v243
      %v565 = vunpack.c.l.b16 %v244
      %v566 = vunpack.c.l.b16 %v245
      %v567 = vunpack.c.l.b16 %v246
      %v568 = vunpack.c.l.b16 %v247
      %v569 = vunpack.c.l.b16 %v248
      %v570 = vunpack.c.l.b16 %v249
      %v571 = vunpack.c.l.b16 %v250
      %v572 = vunpack.c.l.b16 %v251
      %v573 = vunpack.c.l.b16 %v252
      %v574 = vunpack.c.l.b16 %v253
      %v575 = vunpack.c.l.b16 %v254
      %v576 = vunpack.c.l.b16 %v255
      %v577 = vunpack.c.l.b16 %v256
      %v578 = vunpack.c.l.b16 %v257
      %v579 = vunpack.c.l.b16 %v258
      %v580 = vunpack.c.l.b16 %v259
      %v581 = vunpack.c.l.b16 %v260
      %v582 = vunpack.c.l.b16 %v261
      %v583 = vunpack.c.l.b16 %v262
      %v584 = vunpack.c.l.b16 %v263
      %v585 = vunpack.c.l.b16 %v264
      %v586 = vunpack.c.l.b16 %v265
      %v587 = vunpack.c.l.b16 %v266
      %v588 = vunpack.c.l.b16 %v267
      %v589 = vunpack.c.l.b16 %v268
      %v590 = vunpack.c.l.b16 %v269
      %v591 = vunpack.c.l.b16 %v270
      %v592 = vunpack.c.l.b16 %v271
      %v593 = vunpack.c.l.b16 %v272
      %v594 = vunpack.c.l.b16 %v273
      %v595 = vunpack.c.l.b16 %v274
      %v596 = vunpack.c.l.b16 %v275
      %v597 = vunpack.c.l.b16 %v276
      %v598 = vunpack.c.l.b16 %v277
      %v599 = vunpack.c.l.b16 %v278
      %v600 = vunpack.c.l.b16 %v279
      %v601 = vunpack.c.l.b16 %v280
      %v602 = vunpack.c.l.b16 %v281
      %v603 = vunpack.c.l.b16 %v282
      %v604 = vunpack.c.l.b16 %v283
      %v605 = vunpack.c.l.b16 %v284
      %v606 = vunpack.c.l.b16 %v285
      %v607 = vunpack.c.l.b16 %v286
      %v608 = vunpack.c.l.b16 %v287
      %v609 = vunpack.c.l.b16 %v288
      %v610 = vunpack.c.l.b16 %v289
      %v611 = vunpack.c.l.b16 %v290
      %v612 = vunpack.c.l.b16 %v291
      %v613 = vunpack.c.l.b16 %v292
      %v614 = vunpack.c.l.b16 %v293
      %v615 = vunpack.c.l.b16 %v294
      %v616 = vunpack.c.l.b16 %v295
      %v617 = vunpack.c.l.b16 %v296
      %v618 = vunpack.c.l.b16 %v297
      %v619 = vunpack.c.l.b16 %v298
      %v620 = vunpack.c.l.b16 %v299
      %v621 = vunpack.c.l.b16 %v300
      %v622 = vunpack.c.l.b16 %v301
      %v623 = vunpack.c.l.b16 %v302
      %v624 = vunpack.c.l.b16 %v303
      %v625 = vunpack.c.l.b16 %v304
      %v626 = vunpack.c.l.b16 %v305
      %v627 = vunpack.c.l.b16 %v306
      %v628 = vunpack.c.l.b16 %v307
      %v629 = vunpack.c.l.b16 %v308
      %v630 = vunpack.c.l.b16 %v309
      %v631 = vunpack.c.l.b16 %v310
      %v632 = vunpack.c.l.b16 %v311
      %v633 = vunpack.c.l.b16 %v312
      %v634 = vunpack.c.l.b16 %v313
      %v635 = vunpack.c.l.b16 %v314
      %v636 = vunpack.c.l.b16 %v315
      %v637 = vunpack.c.l.b16 %v316
      %v638 = vunpack.c.l.b16 %v317
      %v639 = vunpack.c.l.b16 %v318
      %v640 = vunpack.c.l.b16 %v319
      %v641 = vunpack.c.l.b16 %v320
      %v642 = vunpack.c.l.b16 %v321
      %v643 = vunpack.c.l.b16 %v322
      %v644 = vunpack.c.l.b16 %v323
      %v645 = vunpack.c.l.b16 %v324
      %v646 = vunpack.c.l.b16 %v325
      %v647 = vunpack.c.l.b16 %v326
      %v648 = vunpack.c.l.b16 %v327
      %v649 = vunpack.c.l.b16 %v328
      %v650 = vunpack.c.l.b16 %v329
      %v651 = vunpack.c.l.b16 %v330
      %v652 = vunpack.c.l.b16 %v331
      %v653 = vunpack.c.l.b16 %v332
      %v654 = vunpack.c.l.b16 %v333
      %v655 = vunpack.c.l.b16 %v334
      %v656 = vunpack.c.l.b16 %v335
      %v657 = vunpack.c.l.b16 %v336
      %v658 = vunpack.c.l.b16 %v337
      %v659 = vunpack.c.l.b16 %v338
      %v660 = vunpack.c.l.b16 %v339
      %v661 = vunpack.c.l.b16 %v340
      %v662 = vunpack.c.l.b16 %v341
      %v663 = vunpack.c.l.b16 %v342
      %v664 = vunpack.c.l.b16 %v343
      %v665 = vunpack.c.l.b16 %v344
      %v666 = vunpack.c.l.b16 %v345
      %v667 = vunpack.c.l.b16 %v346
      %v668 = vunpack.c.l.b16 %v347
      %v669 = vunpack.c.l.b16 %v348
      %v670 = vunpack.c.l.b16 %v349
      %v671 = vpack.c.b16 %v544, %v543
      %v672 = vpack.c.b16 %v546, %v545
      %v673 = vpack.c.b16 %v548, %v547
      %v674 = vpack.c.b16 %v550, %v549
      %v675 = vpack.c.b16 %v552, %v551
      %v676 = vpack.c.b16 %v554, %v553
      %v677 = vpack.c.b16 %v556, %v555
      %v678 = vpack.c.b16 %v558, %v557
      %v679 = vpack.c.b16 %v560, %v559
      %v680 = vpack.c.b16 %v562, %v561
      %v681 = vpack.c.b16 %v564, %v563
      %v682 = vpack.c.b16 %v566, %v565
      %v683 = vpack.c.b16 %v568, %v567
      %v684 = vpack.c.b16 %v570, %v569
      %v685 = vpack.c.b16 %v572, %v571
      %v686 = vpack.c.b16 %v574, %v573
      %v687 = vpack.c.b16 %v576, %v575
      %v688 = vpack.c.b16 %v578, %v577
      %v689 = vpack.c.b16 %v580, %v579
      %v690 = vpack.c.b16 %v582, %v581
      %v691 = vpack.c.b16 %v584, %v583
      %v692 = vpack.c.b16 %v586, %v585
      %v693 = vpack.c.b16 %v588, %v587
      %v694 = vpack.c.b16 %v590, %v589
      %v695 = vpack.c.b16 %v592, %v591
      %v696 = vpack.c.b16 %v594, %v593
      %v697 = vpack.c.b16 %v596, %v595
      %v698 = vpack.c.b16 %v598, %v597
      %v699 = vpack.c.b16 %v600, %v599
      %v700 = vpack.c.b16 %v602, %v601
      %v701 = vpack.c.b16 %v604, %v603
      %v702 = vpack.c.b16 %v606, %v605
      %v703 = vpack.c.b16 %v608, %v607
      %v704 = vpack.c.b16 %v610, %v609
      %v705 = vpack.c.b16 %v612, %v611
      %v706 = vpack.c.b16 %v614, %v613
      %v707 = vpack.c.b16 %v616, %v615
      %v708 = vpack.c.b16 %v618, %v617
      %v709 = vpack.c.b16 %v620, %v619
      %v710 = vpack.c.b16 %v622, %v621
      %v711 = vpack.c.b16 %v624, %v623
      %v712 = vpack.c.b16 %v626, %v625
      %v713 = vpack.c.b16 %v628, %v627
      %v714 = vpack.c.b16 %v630, %v629
      %v715 = vpack.c.b16 %v632, %v631
      %v716 = vpack.c.b16 %v634, %v633
      %v717 = vpack.c.b16 %v636, %v635
      %v718 = vpack.c.b16 %v638, %v637
      %v719 = vpack.c.b16 %v640, %v639
      %v720 = vpack.c.b16 %v642, %v641
      %v721 = vpack.c.b16 %v644, %v643
      %v722 = vpack.c.b16 %v646, %v645
      %v723 = vpack.c.b16 %v648, %v647
      %v724 = vpack.c.b16 %v650, %v649
      %v725 = vpack.c.b16 %v652, %v651
      %v726 = vpack.c.b16 %v654, %v653
      %v727 = vpack.c.b16 %v656, %v655
      %v728 = vpack.c.b16 %v658, %v657
      %v729 = vpack.c.b16 %v660, %v659
      %v730 = vpack.c.b16 %v662, %v661
      %v731 = vpack.c.b16 %v664, %v663
      %v732 = vpack.c.b16 %v666, %v665
      %v733 = vpack.c.b16 %v668, %v667
      %v734 = vpack.c.b16 %v670, %v669
      %799 = vmatprep.subr.bf16.mxu0 0
      %800 = vmatpush1.bf16.msra.mxu0 %v678
      %801 = vmatprep.subr.bf16.mxu0 0
      %802 = vmatpush1.bf16.msra.mxu0 %v677
      %803 = vmatprep.subr.bf16.mxu0 0
      %804 = vmatpush1.bf16.msra.mxu0 %v676
      %805 = vmatprep.subr.bf16.mxu0 0
      %806 = vmatpush1.bf16.msra.mxu0 %v675
      %807 = vmatprep.subr.bf16.mxu0 0
      %808 = vmatpush1.bf16.msra.mxu0 %v674
      %809 = vmatprep.subr.bf16.mxu0 0
      %810 = vmatpush1.bf16.msra.mxu0 %v673
      %811 = vmatprep.subr.bf16.mxu0 0
      %812 = vmatpush1.bf16.msra.mxu0 %v672
      %813 = vmatprep.subr.bf16.mxu0 0
      %814 = vmatpush1.bf16.msra.mxu0 %v671
      %815 = vmatprep.subr.bf16.mxu0 0
      %816 = vmatpush2.bf16.msra.mxu0 %v686
      %817 = vmatprep.subr.bf16.mxu0 0
      %818 = vmatpush2.bf16.msra.mxu0 %v685
      %819 = vmatprep.subr.bf16.mxu0 0
      %820 = vmatpush2.bf16.msra.mxu0 %v684
      %821 = vmatprep.subr.bf16.mxu0 0
      %822 = vmatpush2.bf16.msra.mxu0 %v683
      %823 = vmatprep.subr.bf16.mxu0 0
      %824 = vmatpush2.bf16.msra.mxu0 %v682
      %825 = vmatprep.subr.bf16.mxu0 0
      %826 = vmatpush2.bf16.msra.mxu0 %v681
      %827 = vmatprep.subr.bf16.mxu0 0
      %828 = vmatpush2.bf16.msra.mxu0 %v680
      %829 = vmatprep.subr.bf16.mxu0 0
      %830 = vmatpush2.bf16.msra.mxu0 %v679
      %831 = vmatprep.mubr.bf16.mxu0 %v395
      %832 = vmatmul.mubr.bf16.gmra.mxu0 %v381
      %v833 = vpop.f32.mrf.mxu0
      %v834 = vadd.f32 %v355, %v833
      %v835 = vpop.f32.mrf.mxu0
      %v836 = vpop.f32.mrf.mxu0
      %v837 = vpop.f32.mrf.mxu0
      %838 = vdwg.mxu0
      %839 = vmatprep.subr.bf16.mxu0 0
      %840 = vmatpush1.bf16.msra.mxu0 %v694
      %841 = vmatprep.subr.bf16.mxu0 0
      %842 = vmatpush1.bf16.msra.mxu0 %v693
      %843 = vmatprep.subr.bf16.mxu0 0
      %844 = vmatpush1.bf16.msra.mxu0 %v692
      %845 = vmatprep.subr.bf16.mxu0 0
      %846 = vmatpush1.bf16.msra.mxu0 %v691
      %847 = vmatprep.subr.bf16.mxu0 0
      %848 = vmatpush1.bf16.msra.mxu0 %v690
      %849 = vmatprep.subr.bf16.mxu0 0
      %850 = vmatpush1.bf16.msra.mxu0 %v689
      %851 = vmatprep.subr.bf16.mxu0 0
      %852 = vmatpush1.bf16.msra.mxu0 %v688
      %853 = vmatprep.subr.bf16.mxu0 0
      %854 = vmatpush1.bf16.msra.mxu0 %v687
      %855 = vmatprep.subr.bf16.mxu0 0
      %856 = vmatpush2.bf16.msra.mxu0 %v702
      %857 = vmatprep.subr.bf16.mxu0 0
      %858 = vmatpush2.bf16.msra.mxu0 %v701
      %859 = vmatprep.subr.bf16.mxu0 0
      %860 = vmatpush2.bf16.msra.mxu0 %v700
      %861 = vmatprep.subr.bf16.mxu0 0
      %862 = vmatpush2.bf16.msra.mxu0 %v699
      %863 = vmatprep.subr.bf16.mxu0 0
      %864 = vmatpush2.bf16.msra.mxu0 %v698
      %865 = vmatprep.subr.bf16.mxu0 0
      %866 = vmatpush2.bf16.msra.mxu0 %v697
      %867 = vmatprep.subr.bf16.mxu0 0
      %868 = vmatpush2.bf16.msra.mxu0 %v696
      %869 = vmatprep.subr.bf16.mxu0 0
      %870 = vmatpush2.bf16.msra.mxu0 %v695
      %871 = vmatprep.mubr.bf16.mxu0 %v405
      %872 = vmatmul.mubr.bf16.gmra.mxu0 %v403
      %v873 = vpop.f32.mrf.mxu0
      %v874 = vadd.f32 %v834, %v873
      %v875 = vpop.f32.mrf.mxu0
      %v876 = vpop.f32.mrf.mxu0
      %v877 = vpop.f32.mrf.mxu0
      %878 = vdwg.mxu0
      %879 = vmatprep.subr.bf16.mxu0 0
      %880 = vmatpush1.bf16.msra.mxu0 %v710
      %881 = vmatprep.subr.bf16.mxu0 0
      %882 = vmatpush1.bf16.msra.mxu0 %v709
      %883 = vmatprep.subr.bf16.mxu0 0
      %884 = vmatpush1.bf16.msra.mxu0 %v708
      %885 = vmatprep.subr.bf16.mxu0 0
      %886 = vmatpush1.bf16.msra.mxu0 %v707
      %887 = vmatprep.subr.bf16.mxu0 0
      %888 = vmatpush1.bf16.msra.mxu0 %v706
      %889 = vmatprep.subr.bf16.mxu0 0
      %890 = vmatpush1.bf16.msra.mxu0 %v705
      %891 = vmatprep.subr.bf16.mxu0 0
      %892 = vmatpush1.bf16.msra.mxu0 %v704
      %893 = vmatprep.subr.bf16.mxu0 0
      %894 = vmatpush1.bf16.msra.mxu0 %v703
      %895 = vmatprep.subr.bf16.mxu0 0
      %896 = vmatpush2.bf16.msra.mxu0 %v718
      %897 = vmatprep.subr.bf16.mxu0 0
      %898 = vmatpush2.bf16.msra.mxu0 %v717
      %899 = vmatprep.subr.bf16.mxu0 0
      %900 = vmatpush2.bf16.msra.mxu0 %v716
      %901 = vmatprep.subr.bf16.mxu0 0
      %902 = vmatpush2.bf16.msra.mxu0 %v715
      %903 = vmatprep.subr.bf16.mxu0 0
      %904 = vmatpush2.bf16.msra.mxu0 %v714
      %905 = vmatprep.subr.bf16.mxu0 0
      %906 = vmatpush2.bf16.msra.mxu0 %v713
      %907 = vmatprep.subr.bf16.mxu0 0
      %908 = vmatpush2.bf16.msra.mxu0 %v712
      %909 = vmatprep.subr.bf16.mxu0 0
      %910 = vmatpush2.bf16.msra.mxu0 %v711
      %911 = vmatprep.mubr.bf16.mxu0 %v402
      %912 = vmatmul.mubr.bf16.gmra.mxu0 %v388
      %v913 = vpop.f32.mrf.mxu0
      %v914 = vadd.f32 %v874, %v913
      %v915 = vpop.f32.mrf.mxu0
      %v916 = vpop.f32.mrf.mxu0
      %v917 = vpop.f32.mrf.mxu0
      %918 = vdwg.mxu0
      %919 = vmatprep.subr.bf16.mxu0 0
      %920 = vmatpush1.bf16.msra.mxu0 %v726
      %921 = vmatprep.subr.bf16.mxu0 0
      %922 = vmatpush1.bf16.msra.mxu0 %v725
      %923 = vmatprep.subr.bf16.mxu0 0
      %924 = vmatpush1.bf16.msra.mxu0 %v724
      %925 = vmatprep.subr.bf16.mxu0 0
      %926 = vmatpush1.bf16.msra.mxu0 %v723
      %927 = vmatprep.subr.bf16.mxu0 0
      %928 = vmatpush1.bf16.msra.mxu0 %v722
      %929 = vmatprep.subr.bf16.mxu0 0
      %930 = vmatpush1.bf16.msra.mxu0 %v721
      %931 = vmatprep.subr.bf16.mxu0 0
      %932 = vmatpush1.bf16.msra.mxu0 %v720
      %933 = vmatprep.subr.bf16.mxu0 0
      %934 = vmatpush1.bf16.msra.mxu0 %v719
      %935 = vmatprep.subr.bf16.mxu0 0
      %936 = vmatpush2.bf16.msra.mxu0 %v734
      %937 = vmatprep.subr.bf16.mxu0 0
      %938 = vmatpush2.bf16.msra.mxu0 %v733
      %939 = vmatprep.subr.bf16.mxu0 0
      %940 = vmatpush2.bf16.msra.mxu0 %v732
      %941 = vmatprep.subr.bf16.mxu0 0
      %942 = vmatpush2.bf16.msra.mxu0 %v731
      %943 = vmatprep.subr.bf16.mxu0 0
      %944 = vmatpush2.bf16.msra.mxu0 %v730
      %945 = vmatprep.subr.bf16.mxu0 0
      %946 = vmatpush2.bf16.msra.mxu0 %v729
      %947 = vmatprep.subr.bf16.mxu0 0
      %948 = vmatpush2.bf16.msra.mxu0 %v728
      %949 = vmatprep.subr.bf16.mxu0 0
      %950 = vmatpush2.bf16.msra.mxu0 %v727
      %951 = vmatprep.mubr.bf16.mxu0 %v406
      %952 = vmatmul.mubr.bf16.gmra.mxu0 %v404
      %v953 = vpop.f32.mrf.mxu0
      %v954 = vadd.f32 %v914, %v953
      %v955 = vpop.f32.mrf.mxu0
      %v956 = vpop.f32.mrf.mxu0
      %v957 = vpop.f32.mrf.mxu0
      %958 = vdwg.mxu0
      %v959 = vmax.f32 %v954, 0.0
      %v960 = vpack.c.bf16 %v959, %v959
      %v961 = vld [vmem:[%s3] sm:$0xf]
      %v962 = vld [vmem:[%s3 + $0x4] sm:$0xf]
      %v963 = vld [vmem:[%s3 + $0x8] sm:$0xf]
      %v964 = vld [vmem:[%s3 + $0xc] sm:$0xf]
      %v965 = vld [vmem:[%s4] sm:$0x1]
      %v967 = vlaneseq
      %v968 = vshrl.u32 %v967, 7
      %v969 = vsub.s32 0, %v968
      %v970 = vrot.slane %v965, %v969
      %v976 = vunpack.c.l.b16 %v961
      %v977 = vunpack.c.l.b16 %v962
      %v978 = vunpack.c.l.b16 %v963
      %v979 = vunpack.c.l.b16 %v964
      %v980 = vpack.c.b16 %v977, %v976
      %v981 = vpack.c.b16 %v979, %v978
      %vm984 = vcmask 261120
      %v986 = vsel %vm984, %v960, 0
      %988 = vmatprep.subr.bf16.mxu0 0
      %989 = vmatpush1.bf16.msra.mxu0 0
      %990 = vmatprep.subr.bf16.mxu0 0
      %991 = vmatpush1.bf16.msra.mxu0 0
      %992 = vmatprep.subr.bf16.mxu0 0
      %993 = vmatpush1.bf16.msra.mxu0 0
      %994 = vmatprep.subr.bf16.mxu0 0
      %995 = vmatpush1.bf16.msra.mxu0 0
      %996 = vmatprep.subr.bf16.mxu0 0
      %997 = vmatpush1.bf16.msra.mxu0 0
      %998 = vmatprep.subr.bf16.mxu0 0
      %999 = vmatpush1.bf16.msra.mxu0 0
      %1000 = vmatprep.subr.bf16.mxu0 0
      %1001 = vmatpush1.bf16.msra.mxu0 %v981
      %1002 = vmatprep.subr.bf16.mxu0 0
      %1003 = vmatpush1.bf16.msra.mxu0 %v980
      %1004 = vmatprep.subr.bf16.mxu0 0
      %1005 = vmatpush2.bf16.msra.mxu0 0
      %1006 = vmatprep.subr.bf16.mxu0 0
      %1007 = vmatpush2.bf16.msra.mxu0 0
      %1008 = vmatprep.subr.bf16.mxu0 0
      %1009 = vmatpush2.bf16.msra.mxu0 0
      %1010 = vmatprep.subr.bf16.mxu0 0
      %1011 = vmatpush2.bf16.msra.mxu0 0
      %1012 = vmatprep.subr.bf16.mxu0 0
      %1013 = vmatpush2.bf16.msra.mxu0 0
      %1014 = vmatprep.subr.bf16.mxu0 0
      %1015 = vmatpush2.bf16.msra.mxu0 0
      %1016 = vmatprep.subr.bf16.mxu0 0
      %1017 = vmatpush2.bf16.msra.mxu0 0
      %1018 = vmatprep.subr.bf16.mxu0 0
      %1019 = vmatpush2.bf16.msra.mxu0 0
      %1020 = vmatprep.mubr.bf16.mxu0 0
      %1021 = vmatmul.mubr.bf16.gmra.mxu0 %v986
      %v1022 = vpop.f32.mrf.mxu0
      %v1023 = vadd.f32 %v970, %v1022
      %v1024 = vpop.f32.mrf.mxu0
      %v1025 = vpop.f32.mrf.mxu0
      %v1026 = vpop.f32.mrf.mxu0
      %1027 = vdwg.mxu0
      %vm1028 = vcmask 123904
      %1029 = vst.msk [vmem:[%s219] sm:$0x3] %vm1028, %v1023
      %p1030 = scmp.lt.s32.totalorder %s16, 2
      %s1031 = scalar_select %p1030, %s16, 2
      %s1032 = smul.addr %s1031, 2
      %s1033 = scalar_lea.vmem %s5, %s1032
      // Predicated region
      $region41: #{triplet_net_forward.1} parent=39 // pred_check
        %p1034 = pneg %p144
      $region42: #{triplet_net_forward.1} parent=39 // pred_check_branch
        %1036 = sbr.rel (%p1034) target = $region44
      $region43: #{triplet_net_forward.1} parent=39 // pred_region
        _
      $region44: #{triplet_net_forward.1} parent=39 // pred_fallthru
        _
    $region40: #{triplet_net_forward.1} parent=5 // pred_fallthru
      _
    %p1037 = scmp.le.s32.totalorder 2, %s11
    // Predicated region
    $region45: #{triplet_net_forward.1} parent=5 // pred_check
      %p1038 = pneg %p1037
    $region46: #{triplet_net_forward.1} parent=5 // pred_check_branch
      %1040 = sbr.rel (%p1038) target = $region48
    $region47: #{triplet_net_forward.1} parent=5 // pred_region
      %s1041 = ssub.s32 %s11, 2
      // Predicated region
      $region49: #{triplet_net_forward.1} parent=47 // pred_check
        %p1042 = pneg %p150
      $region50: #{triplet_net_forward.1} parent=47 // pred_check_branch
        %1044 = sbr.rel (%p1042) target = $region52
      $region51: #{triplet_net_forward.1} parent=47 // pred_region
        %p1045 = scmp.lt.s32.totalorder %s17, 2
        %s1046 = scalar_select %p1045, %s17, 2
        %s1047 = smul.addr %s1046, 2
        %s1048 = scalar_lea.vmem %s5, %s1047
      $region52: #{triplet_net_forward.1} parent=47 // pred_fallthru
        _
    $region48: #{triplet_net_forward.1} parent=5 // pred_fallthru
      _
  $region6: #{triplet_net_forward.1} parent=0 // loop_footer
    %s15 = sadd.s32 1, %s11
  $region7: #{triplet_net_forward.1} parent=0 // loop_footer_branch
    %10 = sbr.rel target = $region3
  $region8: #{triplet_net_forward.1} parent=0 // loop_exit
    _

</llo_original>
